<compile_context>
chip_gen: v7x
topology: tpu7x:2x2x1
jax: 0.10.0
libtpu: 0.0.40
codegen_flags: <defaults>
</compile_context>

<pallas_src>
import jax
import jax.numpy as jnp
from jax.experimental import pallas as pl
from jax.experimental.pallas import tpu as pltpu

HIDDEN = 768   # roberta hidden size (fc1 in_features)
LABELS = 65    # fc1 out_features; 2 * 65 = 130 = fc2 in_features
LANES = 128    # LABELS zero-padded to one full vreg lane width
TILE_B = 8     # batch tile for the batched variant (multiple of 8 sublanes)


# --------------------------------------------------------------------------
# One-time parameter preprocessing (hoisted out of the per-call path).
# --------------------------------------------------------------------------
def prepare_params(w1, b1, w2, b2):
    """w1: (LABELS, HIDDEN); b1: (LABELS,); w2: (1, 2*LABELS); b2: (1,).

    Returns (w1t, b1p, w2rows, b2r) with LABELS zero-padded to LANES:
      w1t    (HIDDEN, LANES)  fc1 weight, transposed + padded
      b1p    (1, LANES)       fc1 bias, padded with zeros
      w2rows (2, LANES)       fc2 weight split into the cls_1 / cls_2 halves
      b2r    (1, 1)           fc2 bias
    """
    w1t = jnp.zeros((HIDDEN, LANES), jnp.float32)
    w1t = w1t.at[:, :LABELS].set(jnp.transpose(w1).astype(jnp.float32))
    b1p = jnp.zeros((1, LANES), jnp.float32)
    b1p = b1p.at[0, :LABELS].set(b1.astype(jnp.float32))
    w2rows = jnp.zeros((2, LANES), jnp.float32)
    w2rows = w2rows.at[0, :LABELS].set(w2[0, :LABELS].astype(jnp.float32))
    w2rows = w2rows.at[1, :LABELS].set(w2[0, LABELS:].astype(jnp.float32))
    b2r = b2.reshape(1, 1).astype(jnp.float32)
    return w1t, b1p, w2rows, b2r


# --------------------------------------------------------------------------
# Single-pair kernel (matches the torch module call signature semantics).
# --------------------------------------------------------------------------
def _distance_kernel(v_ref, w1t_ref, b1_ref, w2_ref, b2_ref, o_ref):
    # Fused fc1 for both vectors: one (2, HIDDEN) x (HIDDEN, LANES) MXU matmul.
    s = jnp.dot(v_ref[...], w1t_ref[...], preferred_element_type=jnp.float32)
    s = jnp.maximum(s + b1_ref[...], 0.0)                      # (2, LANES), padded lanes stay 0
    # fc2 over cat(cls_1, cls_2) as a VPU multiply + XLU reduce (no tiny MXU dots).
    per_row = jnp.sum(s * w2_ref[...], axis=1, keepdims=True)  # (2, 1)
    o_ref[...] = jnp.sum(per_row, axis=0, keepdims=True) + b2_ref[...]   # (1, 1)


@jax.jit
def defined_distance(vec_1, vec_2, w1t, b1p, w2rows, b2r):
    """vec_1, vec_2: (HIDDEN,) f32.  Weights from prepare_params().
    Returns shape (1,) f32 (matches the torch module)."""
    v = jnp.stack([vec_1, vec_2], axis=0).astype(jnp.float32)   # (2, HIDDEN)
    vmem = pl.BlockSpec(memory_space=pltpu.MemorySpace.VMEM)
    out = pl.pallas_call(
        _distance_kernel,
        out_shape=jax.ShapeDtypeStruct((1, 1), jnp.float32),
        in_specs=[vmem] * 5,
        out_specs=vmem,
    )(v, w1t, b1p, w2rows, b2r)
    return out.reshape(1)


# --------------------------------------------------------------------------
# Batched variant: many (vec_1, vec_2) pairs, grid over batch tiles.
# Weights use constant index_maps so they stay resident in VMEM across steps.
# --------------------------------------------------------------------------
def _distance_batched_kernel(v1_ref, v2_ref, w1t_ref, b1_ref,
                             w2a_ref, w2b_ref, b2_ref, o_ref):
    s1 = jnp.dot(v1_ref[...], w1t_ref[...], preferred_element_type=jnp.float32)
    s1 = jnp.maximum(s1 + b1_ref[...], 0.0)                    # (TILE_B, LANES)
    s2 = jnp.dot(v2_ref[...], w1t_ref[...], preferred_element_type=jnp.float32)
    s2 = jnp.maximum(s2 + b1_ref[...], 0.0)                    # (TILE_B, LANES)
    o_ref[...] = (jnp.sum(s1 * w2a_ref[...], axis=1, keepdims=True)
                  + jnp.sum(s2 * w2b_ref[...], axis=1, keepdims=True)
                  + b2_ref[...])                               # (TILE_B, 1)


@jax.jit
def defined_distance_batched(v1, v2, w1t, b1p, w2rows, b2r):
    """v1, v2: (B, HIDDEN) pairs.  Returns (B,) f32 distances."""
    B = v1.shape[0]
    assert B % TILE_B == 0, "batch must be a multiple of TILE_B"
    w2a = w2rows[0:1, :]   # (1, LANES)
    w2b = w2rows[1:2, :]   # (1, LANES)
    out = pl.pallas_call(
        _distance_batched_kernel,
        out_shape=jax.ShapeDtypeStruct((B, 1), jnp.float32),
        grid=(B // TILE_B,),
        in_specs=[
            pl.BlockSpec((TILE_B, HIDDEN), lambda i: (i, 0)),   # v1 tile
            pl.BlockSpec((TILE_B, HIDDEN), lambda i: (i, 0)),   # v2 tile
            pl.BlockSpec((HIDDEN, LANES), lambda i: (0, 0)),    # w1t, resident
            pl.BlockSpec((1, LANES), lambda i: (0, 0)),         # b1, resident
            pl.BlockSpec((1, LANES), lambda i: (0, 0)),         # w2 row for cls_1
            pl.BlockSpec((1, LANES), lambda i: (0, 0)),         # w2 row for cls_2
            pl.BlockSpec((1, 1), lambda i: (0, 0)),             # b2
        ],
        out_specs=pl.BlockSpec((TILE_B, 1), lambda i: (i, 0)),
        compiler_params=pltpu.CompilerParams(
            dimension_semantics=("parallel",)),                 # 2x on v7x dual-TC
    )(v1.astype(jnp.float32), v2.astype(jnp.float32), w1t, b1p, w2a, w2b, b2r)
    return out.reshape(B)


# --------------------------------------------------------------------------
# Pure-JAX reference (mirrors the torch forward exactly).
# --------------------------------------------------------------------------
def _reference(vec_1, vec_2, w1, b1, w2, b2):
    c1 = jnp.maximum(vec_1 @ w1.T + b1, 0.0)
    c2 = jnp.maximum(vec_2 @ w1.T + b1, 0.0)
    cat = jnp.concatenate([c1, c2], axis=0)
    return cat @ w2.T + b2


if __name__ == "__main__":
    key = jax.random.PRNGKey(0)
    k1, k2, k3, k4, k5, k6, k7, k8 = jax.random.split(key, 8)

    # deterministic synthetic parameters (shapes dictated by the module's __init__)
    w1 = jax.random.normal(k1, (LABELS, HIDDEN), jnp.float32) * 0.02   # fc1.weight
    b1 = jax.random.normal(k2, (LABELS,), jnp.float32) * 0.02          # fc1.bias
    w2 = jax.random.normal(k3, (1, 2 * LABELS), jnp.float32) * 0.02    # fc2.weight
    b2 = jax.random.normal(k4, (1,), jnp.float32) * 0.02               # fc2.bias

    # one-time weight preprocessing, hoisted out of the per-call path
    params = prepare_params(w1, b1, w2, b2)
    params = jax.block_until_ready(params)

    # ---- single-pair path (exact module semantics) ----
    vec_1 = jax.random.normal(k5, (HIDDEN,), jnp.float32)
    vec_2 = jax.random.normal(k6, (HIDDEN,), jnp.float32)

    out = defined_distance(vec_1, vec_2, *params)
    jax.block_until_ready(out)

    ref = _reference(vec_1, vec_2, w1, b1, w2, b2)
    assert out.shape == (1,)
    assert jnp.allclose(out, ref, atol=1e-3, rtol=1e-3), (out, ref)

    # ---- batched path (many pairs, amortizes launch + weight DMA) ----
    B = 64
    v1s = jax.random.normal(k7, (B, HIDDEN), jnp.float32)
    v2s = jax.random.normal(k8, (B, HIDDEN), jnp.float32)

    out_b = defined_distance_batched(v1s, v2s, *params)
    jax.block_until_ready(out_b)

    ref_b = jax.vmap(_reference, in_axes=(0, 0, None, None, None, None))(
        v1s, v2s, w1, b1, w2, b2).reshape(B)
    assert out_b.shape == (B,)
    assert jnp.allclose(out_b, ref_b, atol=1e-3, rtol=1e-3), (out_b, ref_b)

    print("KERNEL_OK")
</pallas_src>

<mosaic_0001>
module attributes {stable_mosaic.version = 11 : i64} {
  func.func @_distance_kernel(%arg0: memref<2x768xf32, #tpu.memory_space<vmem>>, %arg1: memref<768x128xf32, #tpu.memory_space<vmem>>, %arg2: memref<1x128xf32, #tpu.memory_space<vmem>>, %arg3: memref<2x128xf32, #tpu.memory_space<vmem>>, %arg4: memref<1x1xf32, #tpu.memory_space<vmem>>, %arg5: memref<1x1xf32, #tpu.memory_space<vmem>>) attributes {dimension_semantics = [], scalar_prefetch = 0 : i64, scratch_operands = 0 : i64, tpu.core_type = #tpu.core_type<tc>} {
    %c0 = arith.constant 0 : index
    %c0_0 = arith.constant 0 : index
    %0 = vector.load %arg0[%c0, %c0_0] : memref<2x768xf32, #tpu.memory_space<vmem>>, vector<2x768xf32>
    %c0_1 = arith.constant 0 : index
    %c0_2 = arith.constant 0 : index
    %1 = vector.load %arg1[%c0_1, %c0_2] : memref<768x128xf32, #tpu.memory_space<vmem>>, vector<768x128xf32>
    %cst = arith.constant dense<0.000000e+00> : vector<2x128xf32>
    %2 = tpu.matmul %0, %1, %cst {dimension_numbers = #tpu.dot_dimension_numbers<[1], [0], [0], [1], [0, 0, 1, 1], [], []>} : vector<2x768xf32>, vector<768x128xf32>, vector<2x128xf32> -> vector<2x128xf32>
    %c0_3 = arith.constant 0 : index
    %c0_4 = arith.constant 0 : index
    %3 = vector.load %arg2[%c0_3, %c0_4] : memref<1x128xf32, #tpu.memory_space<vmem>>, vector<1x128xf32>
    %4 = vector.broadcast %3 : vector<1x128xf32> to vector<2x128xf32>
    %5 = arith.addf %2, %4 : vector<2x128xf32>
    %cst_5 = arith.constant 0.000000e+00 : f32
    %6 = vector.broadcast %cst_5 : f32 to vector<2x128xf32>
    %7 = arith.maximumf %5, %6 : vector<2x128xf32>
    %c0_6 = arith.constant 0 : index
    %c0_7 = arith.constant 0 : index
    %8 = vector.load %arg3[%c0_6, %c0_7] : memref<2x128xf32, #tpu.memory_space<vmem>>, vector<2x128xf32>
    %9 = arith.mulf %7, %8 : vector<2x128xf32>
    %cst_8 = arith.constant dense<0.000000e+00> : vector<2xf32>
    %10 = vector.multi_reduction <add>, %9, %cst_8 [1] : vector<2x128xf32> to vector<2xf32>
    %11 = vector.shape_cast %10 : vector<2xf32> to vector<2x1xf32>
    %cst_9 = arith.constant dense<0.000000e+00> : vector<1xf32>
    %12 = vector.multi_reduction <add>, %11, %cst_9 [0] : vector<2x1xf32> to vector<1xf32>
    %13 = vector.shape_cast %12 : vector<1xf32> to vector<1x1xf32>
    %c0_10 = arith.constant 0 : index
    %c0_11 = arith.constant 0 : index
    %14 = vector.load %arg4[%c0_10, %c0_11] : memref<1x1xf32, #tpu.memory_space<vmem>>, vector<1x1xf32>
    %15 = arith.addf %13, %14 : vector<1x1xf32>
    %c0_12 = arith.constant 0 : index
    %c0_13 = arith.constant 0 : index
    %16 = vector.load %arg5[%c0_12, %c0_13] : memref<1x1xf32, #tpu.memory_space<vmem>>, vector<1x1xf32>
    tpu.vector_store %arg5[%c0_12, %c0_13], %15 {strides = array<i32>} : memref<1x1xf32, #tpu.memory_space<vmem>>, vector<1x1xf32>,
    return
  }
}

</mosaic_0001>

<llo_original>
// kernel: defined_distance.1
$region0: #{defined_distance.1}
  #allocation0 [shape = 'u32[]', space=smem, size = 0x4, offset = 0x4, fixed_abs, tag = 'smem constant byte address 0x4 - core index']
  #allocation1 [shape = 'u32[144,128]{1,0:T(1,128)}', space=vmem, size = 0x12000, scoped, tag = 'internal scratch']
  #allocation2 [shape = 'f32[1,1]{1,0:T(1,128)S(1)}', space=vmem, size = 0x200, scoped, tag = 'scoped memory for defined_distance.1']
  %s0 = inlined_call_operand.vmem [shape: f32[2,768], index: 0, kind: input, shape index: {}]
  %s1 = inlined_call_operand.hbm [shape: f32[768,128], index: 1, kind: input, shape index: {}]
  %s2 = inlined_call_operand.vmem [shape: f32[1,128], index: 2, kind: input, shape index: {}]
  %s3 = inlined_call_operand.vmem [shape: f32[2,128], index: 3, kind: input, shape index: {}]
  %s4 = inlined_call_operand.<no memory space> [shape: f32[1,1], index: 4, kind: input, shape index: {}]
  %s5 = inlined_call_operand.hbm [shape: f32[1,1], index: 5, kind: output, shape index: {}]
  %s6 = sld [smem:[#allocation0]]
  $region34: #{defined_distance.1} parent=0
    _
  %s8 = ssub.s32 1, %s6
  %s9 = scalar_select 0, %s8, %s6
  %v10 = vstv %s4
  %11 = vst [vmem:[#allocation2] sm:$0x1] %v10
  $region1: #{defined_distance.1} parent=0
    #allocation3 [shape = 'u8[393216]{0}', space=vmem, size = 0x60000, scoped, tag = 'input window, operand 1, single buffered']
    #allocation4 [shape = 's32[1]{0}', space=sflag, size = 0x4, scoped, tag = 'scoped memory for defined_distance.1']
    #allocation5 [shape = 's32[1]{0}', space=sflag, size = 0x4, scoped, tag = 'scoped memory for defined_distance.1']
    #allocation6 [shape = 'u8[512]{0}', space=vmem, size = 0x400, scoped, tag = 'output window, operand 0, single buffered']
    %12 = vsyncpa [#allocation4], 0
    %13 = vsyncpa [#allocation5], 0
    // Predicated region
    $region2: #{defined_distance.1} parent=1 // pred_check
      _
    $region3: #{defined_distance.1} parent=1 // pred_check_branch
      %15 = sbr.rel (0) target = $region5
    $region4: #{defined_distance.1} parent=1 // pred_region
      _
    $region5: #{defined_distance.1} parent=1 // pred_fallthru
      _
    // Predicated region
    $region6: #{defined_distance.1} parent=1 // pred_check
      _
    $region7: #{defined_distance.1} parent=1 // pred_check_branch
      %17 = sbr.rel (0) target = $region9
    $region8: #{defined_distance.1} parent=1 // pred_region
      %s19 = ssub.s32 12288, 12288
      %20 = vsyncadd [#allocation4], %s19
      %s21 = sshll.u32 [#allocation3], 4
      %s22 = int_to_ptr.vmem [resolvable:$true] %s21
      %27 = dma.hbm_to_vmem [thread:$0]  %s1, 12288, %s22, [#allocation4], 128, 128, 8
    $region9: #{defined_distance.1} parent=1 // pred_fallthru
      _
    // Predicated region
    $region10: #{defined_distance.1} parent=1 // pred_check
      _
    $region11: #{defined_distance.1} parent=1 // pred_check_branch
      %29 = sbr.rel (0) target = $region13
    $region12: #{defined_distance.1} parent=1 // pred_region
      _
    $region13: #{defined_distance.1} parent=1 // pred_fallthru
      _
    // Predicated region
    $region14: #{defined_distance.1} parent=1 // pred_check
      _
    $region15: #{defined_distance.1} parent=1 // pred_check_branch
      %31 = sbr.rel (0) target = $region17
    $region16: #{defined_distance.1} parent=1 // pred_region
      _
    $region17: #{defined_distance.1} parent=1 // pred_fallthru
      _
    // Predicated region
    $region18: #{defined_distance.1} parent=1 // pred_check
      _
    $region19: #{defined_distance.1} parent=1 // pred_check_branch
      %33 = sbr.rel (0) target = $region21
    $region20: #{defined_distance.1} parent=1 // pred_region
      _
    $region21: #{defined_distance.1} parent=1 // pred_fallthru
      _
    // Predicated region
    $region22: #{defined_distance.1} parent=1 // pred_check
      _
    $region23: #{defined_distance.1} parent=1 // pred_check_branch
      %35 = sbr.rel (0) target = $region25
    $region24: #{defined_distance.1} parent=1 // pred_region
      %36 = dma.done [#allocation4], 12288
    $region25: #{defined_distance.1} parent=1 // pred_fallthru
      _
    %v37 = vld [vmem:[%s0] sm:$0xff]
    %v38 = vld [vmem:[%s0 + $0x8] sm:$0xf]
    %v39 = vld [vmem:[#allocation3] sm:$0xff]
    %v40 = vld [vmem:[#allocation3 + $0x8] sm:$0xff]
    %v41 = vld [vmem:[#allocation3 + $0x10] sm:$0xff]
    %v42 = vld [vmem:[#allocation3 + $0x18] sm:$0xff]
    %v43 = vld [vmem:[#allocation3 + $0x20] sm:$0xff]
    %v44 = vld [vmem:[#allocation3 + $0x28] sm:$0xff]
    %v45 = vld [vmem:[#allocation3 + $0x30] sm:$0xff]
    %v46 = vld [vmem:[#allocation3 + $0x38] sm:$0xff]
    %v47 = vld [vmem:[#allocation3 + $0x40] sm:$0xff]
    %v48 = vld [vmem:[#allocation3 + $0x48] sm:$0xff]
    %v49 = vld [vmem:[#allocation3 + $0x50] sm:$0xff]
    %v50 = vld [vmem:[#allocation3 + $0x58] sm:$0xff]
    %v51 = vld [vmem:[#allocation3 + $0x60] sm:$0xff]
    %v52 = vld [vmem:[#allocation3 + $0x68] sm:$0xff]
    %v53 = vld [vmem:[#allocation3 + $0x70] sm:$0xff]
    %v54 = vld [vmem:[#allocation3 + $0x78] sm:$0xff]
    %v55 = vld [vmem:[#allocation3 + $0x80] sm:$0xff]
    %v56 = vld [vmem:[#allocation3 + $0x88] sm:$0xff]
    %v57 = vld [vmem:[#allocation3 + $0x90] sm:$0xff]
    %v58 = vld [vmem:[#allocation3 + $0x98] sm:$0xff]
    %v59 = vld [vmem:[#allocation3 + $0xa0] sm:$0xff]
    %v60 = vld [vmem:[#allocation3 + $0xa8] sm:$0xff]
    %v61 = vld [vmem:[#allocation3 + $0xb0] sm:$0xff]
    %v62 = vld [vmem:[#allocation3 + $0xb8] sm:$0xff]
    %v63 = vld [vmem:[#allocation3 + $0xc0] sm:$0xff]
    %v64 = vld [vmem:[#allocation3 + $0xc8] sm:$0xff]
    %v65 = vld [vmem:[#allocation3 + $0xd0] sm:$0xff]
    %v66 = vld [vmem:[#allocation3 + $0xd8] sm:$0xff]
    %v67 = vld [vmem:[#allocation3 + $0xe0] sm:$0xff]
    %v68 = vld [vmem:[#allocation3 + $0xe8] sm:$0xff]
    %v69 = vld [vmem:[#allocation3 + $0xf0] sm:$0xff]
    %v70 = vld [vmem:[#allocation3 + $0xf8] sm:$0xff]
    %v71 = vld [vmem:[#allocation3 + $0x100] sm:$0xff]
    %v72 = vld [vmem:[#allocation3 + $0x108] sm:$0xff]
    %v73 = vld [vmem:[#allocation3 + $0x110] sm:$0xff]
    %v74 = vld [vmem:[#allocation3 + $0x118] sm:$0xff]
    %v75 = vld [vmem:[#allocation3 + $0x120] sm:$0xff]
    %v76 = vld [vmem:[#allocation3 + $0x128] sm:$0xff]
    %v77 = vld [vmem:[#allocation3 + $0x130] sm:$0xff]
    %v78 = vld [vmem:[#allocation3 + $0x138] sm:$0xff]
    %v79 = vld [vmem:[#allocation3 + $0x140] sm:$0xff]
    %v80 = vld [vmem:[#allocation3 + $0x148] sm:$0xff]
    %v81 = vld [vmem:[#allocation3 + $0x150] sm:$0xff]
    %v82 = vld [vmem:[#allocation3 + $0x158] sm:$0xff]
    %v83 = vld [vmem:[#allocation3 + $0x160] sm:$0xff]
    %v84 = vld [vmem:[#allocation3 + $0x168] sm:$0xff]
    %v85 = vld [vmem:[#allocation3 + $0x170] sm:$0xff]
    %v86 = vld [vmem:[#allocation3 + $0x178] sm:$0xff]
    %v87 = vld [vmem:[#allocation3 + $0x180] sm:$0xff]
    %v88 = vld [vmem:[#allocation3 + $0x188] sm:$0xff]
    %v89 = vld [vmem:[#allocation3 + $0x190] sm:$0xff]
    %v90 = vld [vmem:[#allocation3 + $0x198] sm:$0xff]
    %v91 = vld [vmem:[#allocation3 + $0x1a0] sm:$0xff]
    %v92 = vld [vmem:[#allocation3 + $0x1a8] sm:$0xff]
    %v93 = vld [vmem:[#allocation3 + $0x1b0] sm:$0xff]
    %v94 = vld [vmem:[#allocation3 + $0x1b8] sm:$0xff]
    %v95 = vld [vmem:[#allocation3 + $0x1c0] sm:$0xff]
    %v96 = vld [vmem:[#allocation3 + $0x1c8] sm:$0xff]
    %v97 = vld [vmem:[#allocation3 + $0x1d0] sm:$0xff]
    %v98 = vld [vmem:[#allocation3 + $0x1d8] sm:$0xff]
    %v99 = vld [vmem:[#allocation3 + $0x1e0] sm:$0xff]
    %v100 = vld [vmem:[#allocation3 + $0x1e8] sm:$0xff]
    %v101 = vld [vmem:[#allocation3 + $0x1f0] sm:$0xff]
    %v102 = vld [vmem:[#allocation3 + $0x1f8] sm:$0xff]
    %v103 = vld [vmem:[#allocation3 + $0x200] sm:$0xff]
    %v104 = vld [vmem:[#allocation3 + $0x208] sm:$0xff]
    %v105 = vld [vmem:[#allocation3 + $0x210] sm:$0xff]
    %v106 = vld [vmem:[#allocation3 + $0x218] sm:$0xff]
    %v107 = vld [vmem:[#allocation3 + $0x220] sm:$0xff]
    %v108 = vld [vmem:[#allocation3 + $0x228] sm:$0xff]
    %v109 = vld [vmem:[#allocation3 + $0x230] sm:$0xff]
    %v110 = vld [vmem:[#allocation3 + $0x238] sm:$0xff]
    %v111 = vld [vmem:[#allocation3 + $0x240] sm:$0xff]
    %v112 = vld [vmem:[#allocation3 + $0x248] sm:$0xff]
    %v113 = vld [vmem:[#allocation3 + $0x250] sm:$0xff]
    %v114 = vld [vmem:[#allocation3 + $0x258] sm:$0xff]
    %v115 = vld [vmem:[#allocation3 + $0x260] sm:$0xff]
    %v116 = vld [vmem:[#allocation3 + $0x268] sm:$0xff]
    %v117 = vld [vmem:[#allocation3 + $0x270] sm:$0xff]
    %v118 = vld [vmem:[#allocation3 + $0x278] sm:$0xff]
    %v119 = vld [vmem:[#allocation3 + $0x280] sm:$0xff]
    %v120 = vld [vmem:[#allocation3 + $0x288] sm:$0xff]
    %v121 = vld [vmem:[#allocation3 + $0x290] sm:$0xff]
    %v122 = vld [vmem:[#allocation3 + $0x298] sm:$0xff]
    %v123 = vld [vmem:[#allocation3 + $0x2a0] sm:$0xff]
    %v124 = vld [vmem:[#allocation3 + $0x2a8] sm:$0xff]
    %v125 = vld [vmem:[#allocation3 + $0x2b0] sm:$0xff]
    %v126 = vld [vmem:[#allocation3 + $0x2b8] sm:$0xff]
    %v127 = vld [vmem:[#allocation3 + $0x2c0] sm:$0xff]
    %v128 = vld [vmem:[#allocation3 + $0x2c8] sm:$0xff]
    %v129 = vld [vmem:[#allocation3 + $0x2d0] sm:$0xff]
    %v130 = vld [vmem:[#allocation3 + $0x2d8] sm:$0xff]
    %v131 = vld [vmem:[#allocation3 + $0x2e0] sm:$0xff]
    %v132 = vld [vmem:[#allocation3 + $0x2e8] sm:$0xff]
    %v133 = vld [vmem:[#allocation3 + $0x2f0] sm:$0xff]
    %v134 = vld [vmem:[#allocation3 + $0x2f8] sm:$0xff]
    %v135 = vld [vmem:[%s2] sm:$0x1]
    %v137 = vlaneseq
    %v138 = vshrl.u32 %v137, 7
    %v139 = vsub.s32 0, %v138
    %v140 = vrot.slane %v135, %v139
    %v144 = vcombine.high %v37, %v37
    %v146 = vunpack.c.l.s4 1983009808
    %v147 = vunpack.c.0.s8 %v146
    %v148 = vlaneseq
    %v149 = vshrl.u32 %v148, 7
    %v150 = vsub.s32 %v147, %v149
    %v151 = vrot.slane %v37, %v150
    %v153 = vunpack.c.l.s4 1983009808
    %v154 = vunpack.c.0.s8 %v153
    %v155 = vlaneseq
    %v156 = vshrl.u32 %v155, 7
    %v157 = vsub.s32 %v154, %v156
    %v158 = vrot.slane %v144, %v157
    %v159 = vcombine.high %v151, %v151
    %v160 = vcombine.high %v158, %v158
    %v162 = vunpack.c.l.s4 1983009808
    %v163 = vunpack.c.0.s8 %v162
    %v164 = vlaneseq
    %v165 = vshrl.u32 %v164, 7
    %v166 = vsub.s32 %v163, %v165
    %v167 = vrot.slane %v38, %v166
    %v168 = vcombine.high %v167, %v167
    %175 = vmatprep.subr.mxu0 0.0
    %176 = vmatpush1.msra.mxu0 %v39
    %177 = vmatprep.subr.mxu0 0.0
    %178 = vmatpush1.msra.mxu0 %v40
    %179 = vmatprep.subr.mxu0 0.0
    %180 = vmatpush1.msra.mxu0 %v41
    %181 = vmatprep.subr.mxu0 0.0
    %182 = vmatpush1.msra.mxu0 %v42
    %183 = vmatprep.subr.mxu0 0.0
    %184 = vmatpush1.msra.mxu0 %v43
    %185 = vmatprep.subr.mxu0 0.0
    %186 = vmatpush1.msra.mxu0 %v44
    %187 = vmatprep.subr.mxu0 0.0
    %188 = vmatpush1.msra.mxu0 %v45
    %189 = vmatprep.subr.mxu0 0.0
    %190 = vmatpush1.msra.mxu0 %v46
    %191 = vmatprep.subr.mxu0 0.0
    %192 = vmatpush1.msra.mxu0 %v47
    %193 = vmatprep.subr.mxu0 0.0
    %194 = vmatpush1.msra.mxu0 %v48
    %195 = vmatprep.subr.mxu0 0.0
    %196 = vmatpush1.msra.mxu0 %v49
    %197 = vmatprep.subr.mxu0 0.0
    %198 = vmatpush1.msra.mxu0 %v50
    %199 = vmatprep.subr.mxu0 0.0
    %200 = vmatpush1.msra.mxu0 %v51
    %201 = vmatprep.subr.mxu0 0.0
    %202 = vmatpush1.msra.mxu0 %v52
    %203 = vmatprep.subr.mxu0 0.0
    %204 = vmatpush1.msra.mxu0 %v53
    %205 = vmatprep.subr.mxu0 0.0
    %206 = vmatpush1.msra.mxu0 %v54
    %207 = vmatprep.subr.mxu0 0.0
    %208 = vmatpush1.msra.mxu0 %v55
    %209 = vmatprep.subr.mxu0 0.0
    %210 = vmatpush1.msra.mxu0 %v56
    %211 = vmatprep.subr.mxu0 0.0
    %212 = vmatpush1.msra.mxu0 %v57
    %213 = vmatprep.subr.mxu0 0.0
    %214 = vmatpush1.msra.mxu0 %v58
    %215 = vmatprep.subr.mxu0 0.0
    %216 = vmatpush1.msra.mxu0 %v59
    %217 = vmatprep.subr.mxu0 0.0
    %218 = vmatpush1.msra.mxu0 %v60
    %219 = vmatprep.subr.mxu0 0.0
    %220 = vmatpush1.msra.mxu0 %v61
    %221 = vmatprep.subr.mxu0 0.0
    %222 = vmatpush1.msra.mxu0 %v62
    %223 = vmatprep.subr.mxu0 0.0
    %224 = vmatpush1.msra.mxu0 %v63
    %225 = vmatprep.subr.mxu0 0.0
    %226 = vmatpush1.msra.mxu0 %v64
    %227 = vmatprep.subr.mxu0 0.0
    %228 = vmatpush1.msra.mxu0 %v65
    %229 = vmatprep.subr.mxu0 0.0
    %230 = vmatpush1.msra.mxu0 %v66
    %231 = vmatprep.subr.mxu0 0.0
    %232 = vmatpush1.msra.mxu0 %v67
    %233 = vmatprep.subr.mxu0 0.0
    %234 = vmatpush1.msra.mxu0 %v68
    %235 = vmatprep.subr.mxu0 0.0
    %236 = vmatpush1.msra.mxu0 %v69
    %237 = vmatprep.subr.mxu0 0.0
    %238 = vmatpush1.msra.mxu0 %v70
    %239 = vmatprep.mubr.f32.mxu0 %v159
    %240 = vmatmul.mubr.f32.gmra.mrb[0].mxu0 %v151
    %v241 = vpop.f32.mrb[0].mxu0
    %v242 = vadd.f32 %v140, %v241
    %v243 = vpop.f32.mrb[0].mxu0
    %244 = vdwg.mxu0
    %245 = vmatprep.subr.mxu0 0.0
    %246 = vmatpush1.msra.mxu0 %v71
    %247 = vmatprep.subr.mxu0 0.0
    %248 = vmatpush1.msra.mxu0 %v72
    %249 = vmatprep.subr.mxu0 0.0
    %250 = vmatpush1.msra.mxu0 %v73
    %251 = vmatprep.subr.mxu0 0.0
    %252 = vmatpush1.msra.mxu0 %v74
    %253 = vmatprep.subr.mxu0 0.0
    %254 = vmatpush1.msra.mxu0 %v75
    %255 = vmatprep.subr.mxu0 0.0
    %256 = vmatpush1.msra.mxu0 %v76
    %257 = vmatprep.subr.mxu0 0.0
    %258 = vmatpush1.msra.mxu0 %v77
    %259 = vmatprep.subr.mxu0 0.0
    %260 = vmatpush1.msra.mxu0 %v78
    %261 = vmatprep.subr.mxu0 0.0
    %262 = vmatpush1.msra.mxu0 %v79
    %263 = vmatprep.subr.mxu0 0.0
    %264 = vmatpush1.msra.mxu0 %v80
    %265 = vmatprep.subr.mxu0 0.0
    %266 = vmatpush1.msra.mxu0 %v81
    %267 = vmatprep.subr.mxu0 0.0
    %268 = vmatpush1.msra.mxu0 %v82
    %269 = vmatprep.subr.mxu0 0.0
    %270 = vmatpush1.msra.mxu0 %v83
    %271 = vmatprep.subr.mxu0 0.0
    %272 = vmatpush1.msra.mxu0 %v84
    %273 = vmatprep.subr.mxu0 0.0
    %274 = vmatpush1.msra.mxu0 %v85
    %275 = vmatprep.subr.mxu0 0.0
    %276 = vmatpush1.msra.mxu0 %v86
    %277 = vmatprep.subr.mxu0 0.0
    %278 = vmatpush1.msra.mxu0 %v87
    %279 = vmatprep.subr.mxu0 0.0
    %280 = vmatpush1.msra.mxu0 %v88
    %281 = vmatprep.subr.mxu0 0.0
    %282 = vmatpush1.msra.mxu0 %v89
    %283 = vmatprep.subr.mxu0 0.0
    %284 = vmatpush1.msra.mxu0 %v90
    %285 = vmatprep.subr.mxu0 0.0
    %286 = vmatpush1.msra.mxu0 %v91
    %287 = vmatprep.subr.mxu0 0.0
    %288 = vmatpush1.msra.mxu0 %v92
    %289 = vmatprep.subr.mxu0 0.0
    %290 = vmatpush1.msra.mxu0 %v93
    %291 = vmatprep.subr.mxu0 0.0
    %292 = vmatpush1.msra.mxu0 %v94
    %293 = vmatprep.subr.mxu0 0.0
    %294 = vmatpush1.msra.mxu0 %v95
    %295 = vmatprep.subr.mxu0 0.0
    %296 = vmatpush1.msra.mxu0 %v96
    %297 = vmatprep.subr.mxu0 0.0
    %298 = vmatpush1.msra.mxu0 %v97
    %299 = vmatprep.subr.mxu0 0.0
    %300 = vmatpush1.msra.mxu0 %v98
    %301 = vmatprep.subr.mxu0 0.0
    %302 = vmatpush1.msra.mxu0 %v99
    %303 = vmatprep.subr.mxu0 0.0
    %304 = vmatpush1.msra.mxu0 %v100
    %305 = vmatprep.subr.mxu0 0.0
    %306 = vmatpush1.msra.mxu0 %v101
    %307 = vmatprep.subr.mxu0 0.0
    %308 = vmatpush1.msra.mxu0 %v102
    %309 = vmatprep.mubr.f32.mxu0 %v160
    %310 = vmatmul.mubr.f32.gmra.mrb[0].mxu0 %v158
    %v311 = vpop.f32.mrb[0].mxu0
    %v312 = vadd.f32 %v242, %v311
    %v313 = vpop.f32.mrb[0].mxu0
    %314 = vdwg.mxu0
    %315 = vmatprep.subr.mxu0 0.0
    %316 = vmatpush1.msra.mxu0 %v103
    %317 = vmatprep.subr.mxu0 0.0
    %318 = vmatpush1.msra.mxu0 %v104
    %319 = vmatprep.subr.mxu0 0.0
    %320 = vmatpush1.msra.mxu0 %v105
    %321 = vmatprep.subr.mxu0 0.0
    %322 = vmatpush1.msra.mxu0 %v106
    %323 = vmatprep.subr.mxu0 0.0
    %324 = vmatpush1.msra.mxu0 %v107
    %325 = vmatprep.subr.mxu0 0.0
    %326 = vmatpush1.msra.mxu0 %v108
    %327 = vmatprep.subr.mxu0 0.0
    %328 = vmatpush1.msra.mxu0 %v109
    %329 = vmatprep.subr.mxu0 0.0
    %330 = vmatpush1.msra.mxu0 %v110
    %331 = vmatprep.subr.mxu0 0.0
    %332 = vmatpush1.msra.mxu0 %v111
    %333 = vmatprep.subr.mxu0 0.0
    %334 = vmatpush1.msra.mxu0 %v112
    %335 = vmatprep.subr.mxu0 0.0
    %336 = vmatpush1.msra.mxu0 %v113
    %337 = vmatprep.subr.mxu0 0.0
    %338 = vmatpush1.msra.mxu0 %v114
    %339 = vmatprep.subr.mxu0 0.0
    %340 = vmatpush1.msra.mxu0 %v115
    %341 = vmatprep.subr.mxu0 0.0
    %342 = vmatpush1.msra.mxu0 %v116
    %343 = vmatprep.subr.mxu0 0.0
    %344 = vmatpush1.msra.mxu0 %v117
    %345 = vmatprep.subr.mxu0 0.0
    %346 = vmatpush1.msra.mxu0 %v118
    %347 = vmatprep.subr.mxu0 0.0
    %348 = vmatpush1.msra.mxu0 %v119
    %349 = vmatprep.subr.mxu0 0.0
    %350 = vmatpush1.msra.mxu0 %v120
    %351 = vmatprep.subr.mxu0 0.0
    %352 = vmatpush1.msra.mxu0 %v121
    %353 = vmatprep.subr.mxu0 0.0
    %354 = vmatpush1.msra.mxu0 %v122
    %355 = vmatprep.subr.mxu0 0.0
    %356 = vmatpush1.msra.mxu0 %v123
    %357 = vmatprep.subr.mxu0 0.0
    %358 = vmatpush1.msra.mxu0 %v124
    %359 = vmatprep.subr.mxu0 0.0
    %360 = vmatpush1.msra.mxu0 %v125
    %361 = vmatprep.subr.mxu0 0.0
    %362 = vmatpush1.msra.mxu0 %v126
    %363 = vmatprep.subr.mxu0 0.0
    %364 = vmatpush1.msra.mxu0 %v127
    %365 = vmatprep.subr.mxu0 0.0
    %366 = vmatpush1.msra.mxu0 %v128
    %367 = vmatprep.subr.mxu0 0.0
    %368 = vmatpush1.msra.mxu0 %v129
    %369 = vmatprep.subr.mxu0 0.0
    %370 = vmatpush1.msra.mxu0 %v130
    %371 = vmatprep.subr.mxu0 0.0
    %372 = vmatpush1.msra.mxu0 %v131
    %373 = vmatprep.subr.mxu0 0.0
    %374 = vmatpush1.msra.mxu0 %v132
    %375 = vmatprep.subr.mxu0 0.0
    %376 = vmatpush1.msra.mxu0 %v133
    %377 = vmatprep.subr.mxu0 0.0
    %378 = vmatpush1.msra.mxu0 %v134
    %379 = vmatprep.mubr.f32.mxu0 %v168
    %380 = vmatmul.mubr.f32.gmra.mrb[0].mxu0 %v167
    %v381 = vpop.f32.mrb[0].mxu0
    %v382 = vadd.f32 %v312, %v381
    %v383 = vpop.f32.mrb[0].mxu0
    %384 = vdwg.mxu0
    %v385 = vmax.f32 %v382, 0.0
    %v386 = vld [vmem:[%s3] sm:$0x3]
    %v387 = vmul.f32 %v385, %v386
    %vm388 = vcmask 1041408
    %v389 = vsel %vm388, %v387, 0.0
    %390 = vadd.xlane.f32.xlu0 %v389
    %v391 = vpop.xlane.xlu0 %390
    %v392 = vsel %vm388, %v391, 0.0
    %v393 = vrot.slane %v392, 4
    %v394 = vadd.f32 %v392, %v393
    %v395 = vrot.slane %v394, 2
    %v396 = vadd.f32 %v394, %v395
    %v397 = vrot.slane %v396, 1
    %v398 = vadd.f32 %v396, %v397
    %v399 = vld [vmem:[#allocation2] sm:$0x1]
    %v400 = vadd.f32 %v398, %v399
    %vm401 = vcmask 0
    %402 = vst.msk [vmem:[#allocation6] sm:$0x1] %vm401, %v400
    // Predicated region
    $region26: #{defined_distance.1} parent=1 // pred_check
      _
    $region27: #{defined_distance.1} parent=1 // pred_check_branch
      %404 = sbr.rel (0) target = $region29
    $region28: #{defined_distance.1} parent=1 // pred_region
      %s406 = ssub.s32 16, 16
      %407 = vsyncadd [#allocation5], %s406
      %s409 = sshll.u32 [#allocation6], 4
      %s410 = int_to_ptr.vmem [resolvable:$true] %s409
      %412 = dma.vmem_to_hbm [thread:$0]  %s410, 16, %s5, [#allocation5]
    $region29: #{defined_distance.1} parent=1 // pred_fallthru
      _
    // Predicated region
    $region30: #{defined_distance.1} parent=1 // pred_check
      _
    $region31: #{defined_distance.1} parent=1 // pred_check_branch
      %414 = sbr.rel (0) target = $region33
    $region32: #{defined_distance.1} parent=1 // pred_region
      %415 = dma.done [#allocation5], 16
    $region33: #{defined_distance.1} parent=1 // pred_fallthru
      _
    %416 = vsyncpa [#allocation4], 1
    %417 = vsyncpa [#allocation5], 1

</llo_original>
